<compile_context>
chip_gen: v6e
topology: v6e:2x2x1
jax: 0.10.0
libtpu: 0.0.40
codegen_flags: <defaults>
</compile_context>

<pallas_src>
import functools

import jax
import jax.numpy as jnp
from jax.experimental import pallas as pl
from jax.experimental.pallas import tpu as pltpu

_SQRT_HALF = 0.7071067811865476  # 1/sqrt(2), for exact erf-GELU


def _mlp_kernel(x_ref, w1_ref, b1_ref, w2_ref, b2_ref, o_ref, acc_ref):
    # Grid = (M tiles [parallel], hidden blocks [arbitrary/reduction]).
    # x_ref : (tile_m, C_in_f)          w1_ref: (C_in_f, tile_h)
    # b1_ref: (1, tile_h)  f32          w2_ref: (tile_h, C_out_f)
    # b2_ref: (1, C_out_f) f32          o_ref : (tile_m, C_out_f)
    # acc_ref: (tile_m, C_out_f) f32 VMEM scratch, resident across hidden axis.
    k = pl.program_id(1)

    @pl.when(k == 0)
    def _init():
        acc_ref[...] = jnp.zeros_like(acc_ref)

    x = x_ref[...].astype(w1_ref.dtype)  # bf16 (or f32) LHS, f32 accumulate
    h = jnp.dot(x, w1_ref[...], preferred_element_type=jnp.float32) + b1_ref[...]
    # exact GELU (matches torch.nn.GELU(approximate='none')), kept in f32
    h = 0.5 * h * (1.0 + jax.lax.erf(h * _SQRT_HALF))
    acc_ref[...] += jnp.dot(h.astype(w2_ref.dtype), w2_ref[...],
                            preferred_element_type=jnp.float32)

    @pl.when(k == pl.num_programs(1) - 1)
    def _finalize():
        o_ref[...] = (acc_ref[...] + b2_ref[...]).astype(o_ref.dtype)


def _round_up(x, m):
    return ((x + m - 1) // m) * m


def _pick_fold(c_in, c_hidden, c_out, m):
    """How many consecutive positions to fold per row for lane-dense output."""
    if c_out >= 128 or 128 % c_out != 0:
        return 1
    g = 128 // c_out
    if m % g != 0:
        return 1
    if g * max(c_in, c_hidden) > 1024:  # keep block-diag weights small
        return 1
    return g


def _pick_hidden_block(ch_f, max_block=2048):
    """Largest multiple of 128 that divides ch_f and is <= max_block."""
    if ch_f <= max_block:
        return ch_f
    b = (max_block // 128) * 128
    while b >= 128:
        if ch_f % b == 0:
            return b
        b -= 128
    return ch_f  # fallback: keep whole hidden resident


@functools.partial(jax.jit, static_argnames=("tile_m", "compute_dtype"))
def conv2d_inplace_linear_mlp_block(x, w1, b1, w2, b2, *, tile_m=512,
                                    compute_dtype=jnp.bfloat16):
    """Fused MLP block: lin2(GELU(lin1(x))), linear along the last axis.

    x : (..., C_in)  channels-last, 2D/3D/4D (same as the PyTorch module)
    w1: (C_in, C_hidden), b1: (C_hidden,)   (Linear weights stored transposed)
    w2: (C_hidden, C_out), b2: (C_out,)
    """
    orig_shape = x.shape
    c_in = orig_shape[-1]
    c_hidden = w1.shape[1]
    c_out = w2.shape[1]

    x2d = x.reshape(-1, c_in)
    m = x2d.shape[0]

    # --- lane-density fold (pack g positions per row when C_out < 128) -----
    g = _pick_fold(c_in, c_hidden, c_out, m)
    if g > 1:
        x2d = x2d.reshape(m // g, g * c_in)  # free row-major reshape
        eye = jnp.eye(g, dtype=compute_dtype)
        w1c = jnp.kron(eye, w1.astype(compute_dtype))   # block-diagonal
        w2c = jnp.kron(eye, w2.astype(compute_dtype))
        b1c = jnp.tile(b1.astype(jnp.float32), g).reshape(1, g * c_hidden)
        b2c = jnp.tile(b2.astype(jnp.float32), g).reshape(1, g * c_out)
    else:
        w1c = w1.astype(compute_dtype)
        w2c = w2.astype(compute_dtype)
        b1c = b1.astype(jnp.float32).reshape(1, c_hidden)
        b2c = b2.astype(jnp.float32).reshape(1, c_out)

    mf = x2d.shape[0]
    cin_f = g * c_in
    ch_f = g * c_hidden
    cout_f = g * c_out

    # --- tiling --------------------------------------------------------------
    tile = _round_up(min(tile_m, _round_up(mf, 8)), 8)
    tile = max(tile, 8)
    grid_m = pl.cdiv(mf, tile)          # ragged last tile handled by Pallas
    tile_h = _pick_hidden_block(ch_f)   # hidden (reduction) blocking
    grid_k = ch_f // tile_h

    # --- VMEM budget (explicit, computed from actual buffers) ---------------
    c_bytes = jnp.dtype(compute_dtype).itemsize
    x_bytes = jnp.dtype(x2d.dtype).itemsize
    o_bytes = jnp.dtype(x.dtype).itemsize
    vmem_needed = (
        2 * tile * cin_f * x_bytes                     # double-buffered x tiles
        + 2 * tile * cout_f * o_bytes                  # double-buffered out tiles
        + 2 * (cin_f * tile_h + tile_h * cout_f) * c_bytes  # weight slabs
        + 2 * (tile_h + cout_f) * 4                    # biases
        + tile * cout_f * 4                            # f32 accumulator scratch
        + 3 * tile * tile_h * 4                        # f32 intermediates
        + (2 << 20)                                    # margin
    )
    vmem_limit = int(min(max(vmem_needed, 32 << 20), 64 << 20))

    cost = pl.CostEstimate(
        flops=int(2 * m * (c_in * c_hidden + c_hidden * c_out)),
        transcendentals=int(m * c_hidden),
        bytes_accessed=int(x2d.size * x_bytes + mf * cout_f * o_bytes
                           + w1c.size * c_bytes + w2c.size * c_bytes
                           + (b1c.size + b2c.size) * 4),
    )

    out2d = pl.pallas_call(
        _mlp_kernel,
        out_shape=jax.ShapeDtypeStruct((mf, cout_f), x.dtype),
        grid_spec=pltpu.PrefetchScalarGridSpec(
            num_scalar_prefetch=0,
            grid=(grid_m, grid_k),
            in_specs=[
                pl.BlockSpec((tile, cin_f), lambda i, k: (i, 0)),
                pl.BlockSpec((cin_f, tile_h), lambda i, k: (0, k)),
                pl.BlockSpec((1, tile_h), lambda i, k: (0, k)),
                pl.BlockSpec((tile_h, cout_f), lambda i, k: (k, 0)),
                pl.BlockSpec((1, cout_f), lambda i, k: (0, 0)),
            ],
            out_specs=pl.BlockSpec((tile, cout_f), lambda i, k: (i, 0)),
            scratch_shapes=[pltpu.VMEM((tile, cout_f), jnp.float32)],
        ),
        compiler_params=pltpu.CompilerParams(
            dimension_semantics=("parallel", "arbitrary"),
            vmem_limit_bytes=vmem_limit,
        ),
        cost_estimate=cost,
    )(x2d, w1c, b1c, w2c, b2c)

    # (mf, g*c_out) row-major == (m, c_out) row-major -> free reshape.
    return out2d.reshape(orig_shape[:-1] + (c_out,))


def _reference(x, w1, b1, w2, b2):
    h = jnp.einsum("...i,ih->...h", x, w1) + b1
    h = 0.5 * h * (1.0 + jax.lax.erf(h * _SQRT_HALF))
    return jnp.einsum("...h,ho->...o", h, w2) + b2


if __name__ == "__main__":
    key = jax.random.PRNGKey(0)
    k_x, k_w1, k_b1, k_w2, k_b2 = jax.random.split(key, 5)

    # Small SAM-MLP-like shapes: embedding dim 32, hidden (mlp_ratio=4) dim 128.
    B, H, W, C_IN = 2, 8, 8, 32
    C_HIDDEN = 4 * C_IN
    C_OUT = C_IN  # SAM MLPBlock: lin2 maps back to the embedding dim

    x = jax.random.normal(k_x, (B, H, W, C_IN), dtype=jnp.float32)

    # Deterministic synthetic parameters (Linear-weight shapes, stored transposed).
    w1 = jax.random.normal(k_w1, (C_IN, C_HIDDEN), dtype=jnp.float32) * 0.05
    b1 = jax.random.normal(k_b1, (C_HIDDEN,), dtype=jnp.float32) * 0.05
    w2 = jax.random.normal(k_w2, (C_HIDDEN, C_OUT), dtype=jnp.float32) * 0.05
    b2 = jax.random.normal(k_b2, (C_OUT,), dtype=jnp.float32) * 0.05

    ref = _reference(x, w1, b1, w2, b2)

    # Exact f32 compute path: must match the reference tightly.
    out_f32 = conv2d_inplace_linear_mlp_block(
        x, w1, b1, w2, b2, compute_dtype=jnp.float32)
    out_f32 = jax.block_until_ready(out_f32)
    assert out_f32.shape == (B, H, W, C_OUT), out_f32.shape
    assert jnp.allclose(out_f32, ref, atol=1e-4, rtol=1e-4), "f32 mismatch vs reference"

    # Fast bf16-matmul path (f32 accumulation): looser tolerance.
    out_bf16 = conv2d_inplace_linear_mlp_block(
        x, w1, b1, w2, b2, compute_dtype=jnp.bfloat16)
    out_bf16 = jax.block_until_ready(out_bf16)
    assert out_bf16.shape == (B, H, W, C_OUT), out_bf16.shape
    assert jnp.allclose(out_bf16, ref, atol=5e-2, rtol=5e-2), "bf16 mismatch vs reference"

    print("KERNEL_OK")
</pallas_src>

<mosaic_0001>
module attributes {stable_mosaic.version = 11 : i64} {
  func.func @_mlp_kernel(%arg0: i32, %arg1: i32, %arg2: memref<32x128xf32, #tpu.memory_space<vmem>>, %arg3: memref<128x512xf32, #tpu.memory_space<vmem>>, %arg4: memref<1x512xf32, #tpu.memory_space<vmem>>, %arg5: memref<512x128xf32, #tpu.memory_space<vmem>>, %arg6: memref<1x128xf32, #tpu.memory_space<vmem>>, %arg7: memref<32x128xf32, #tpu.memory_space<vmem>>, %arg8: memref<32x128xf32, #tpu.memory_space<vmem>>) attributes {dimension_semantics = [#tpu.dimension_semantics<parallel>, #tpu.dimension_semantics<arbitrary>], iteration_bounds = array<i64: 1, 1>, scalar_prefetch = 0 : i64, scratch_operands = 1 : i64, tpu.core_type = #tpu.core_type<tc>, window_params = [{transform_indices = @transform_0, window_bounds = array<i64: 32, 128>}, {transform_indices = @transform_1, window_bounds = array<i64: 128, 512>}, {transform_indices = @transform_2, window_bounds = array<i64: 1, 512>}, {transform_indices = @transform_3, window_bounds = array<i64: 512, 128>}, {pipeline_mode = #tpu.pipeline_mode<synchronous>, transform_indices = @transform_4, window_bounds = array<i64: 1, 128>}, {transform_indices = @transform_5, window_bounds = array<i64: 32, 128>}]} {
    %c0_i32 = arith.constant 0 : i32
    %0 = arith.cmpi eq, %arg1, %c0_i32 : i32
    %1 = arith.extui %0 : i1 to i32
    %c0_i32_0 = arith.constant 0 : i32
    %2 = arith.cmpi ne, %1, %c0_i32_0 : i32
    scf.if %2 {
      %cst_18 = arith.constant 0.000000e+00 : f32
      %25 = vector.broadcast %cst_18 : f32 to vector<32x128xf32>
      %c0_19 = arith.constant 0 : index
      %c0_20 = arith.constant 0 : index
      %26 = vector.load %arg8[%c0_19, %c0_20] : memref<32x128xf32, #tpu.memory_space<vmem>>, vector<32x128xf32>
      tpu.vector_store %arg8[%c0_19, %c0_20], %25 {strides = array<i32>} : memref<32x128xf32, #tpu.memory_space<vmem>>, vector<32x128xf32>,
    } else {
    }
    %c0 = arith.constant 0 : index
    %c0_1 = arith.constant 0 : index
    %3 = vector.load %arg2[%c0, %c0_1] : memref<32x128xf32, #tpu.memory_space<vmem>>, vector<32x128xf32>
    %c0_2 = arith.constant 0 : index
    %c0_3 = arith.constant 0 : index
    %4 = vector.load %arg3[%c0_2, %c0_3] : memref<128x512xf32, #tpu.memory_space<vmem>>, vector<128x512xf32>
    %cst = arith.constant dense<0.000000e+00> : vector<32x512xf32>
    %5 = tpu.matmul %3, %4, %cst {dimension_numbers = #tpu.dot_dimension_numbers<[1], [0], [0], [1], [0, 0, 1, 1], [], []>} : vector<32x128xf32>, vector<128x512xf32>, vector<32x512xf32> -> vector<32x512xf32>
    %c0_4 = arith.constant 0 : index
    %c0_5 = arith.constant 0 : index
    %6 = vector.load %arg4[%c0_4, %c0_5] : memref<1x512xf32, #tpu.memory_space<vmem>>, vector<1x512xf32>
    %7 = vector.broadcast %6 : vector<1x512xf32> to vector<32x512xf32>
    %8 = arith.addf %5, %7 : vector<32x512xf32>
    %cst_6 = arith.constant 5.000000e-01 : f32
    %9 = vector.broadcast %cst_6 : f32 to vector<32x512xf32>
    %10 = arith.mulf %9, %8 : vector<32x512xf32>
    %cst_7 = arith.constant 0.707106769 : f32
    %11 = vector.broadcast %cst_7 : f32 to vector<32x512xf32>
    %12 = arith.mulf %8, %11 : vector<32x512xf32>
    %13 = math.erf %12 : vector<32x512xf32>
    %cst_8 = arith.constant 1.000000e+00 : f32
    %14 = vector.broadcast %cst_8 : f32 to vector<32x512xf32>
    %15 = arith.addf %14, %13 : vector<32x512xf32>
    %16 = arith.mulf %10, %15 : vector<32x512xf32>
    %c0_9 = arith.constant 0 : index
    %c0_10 = arith.constant 0 : index
    %17 = vector.load %arg8[%c0_9, %c0_10] : memref<32x128xf32, #tpu.memory_space<vmem>>, vector<32x128xf32>
    %c0_11 = arith.constant 0 : index
    %c0_12 = arith.constant 0 : index
    %18 = vector.load %arg5[%c0_11, %c0_12] : memref<512x128xf32, #tpu.memory_space<vmem>>, vector<512x128xf32>
    %cst_13 = arith.constant dense<0.000000e+00> : vector<32x128xf32>
    %19 = tpu.matmul %16, %18, %cst_13 {dimension_numbers = #tpu.dot_dimension_numbers<[1], [0], [0], [1], [0, 0, 1, 1], [], []>} : vector<32x512xf32>, vector<512x128xf32>, vector<32x128xf32> -> vector<32x128xf32>
    %20 = arith.addf %17, %19 : vector<32x128xf32>
    %c0_14 = arith.constant 0 : index
    %c0_15 = arith.constant 0 : index
    %21 = vector.load %arg8[%c0_14, %c0_15] : memref<32x128xf32, #tpu.memory_space<vmem>>, vector<32x128xf32>
    tpu.vector_store %arg8[%c0_14, %c0_15], %20 {strides = array<i32>} : memref<32x128xf32, #tpu.memory_space<vmem>>, vector<32x128xf32>,
    %c0_i32_16 = arith.constant 0 : i32
    %22 = arith.cmpi eq, %arg1, %c0_i32_16 : i32
    %23 = arith.extui %22 : i1 to i32
    %c0_i32_17 = arith.constant 0 : i32
    %24 = arith.cmpi ne, %23, %c0_i32_17 : i32
    scf.if %24 {
      %c0_18 = arith.constant 0 : index
      %c0_19 = arith.constant 0 : index
      %25 = vector.load %arg8[%c0_18, %c0_19] : memref<32x128xf32, #tpu.memory_space<vmem>>, vector<32x128xf32>
      %c0_20 = arith.constant 0 : index
      %c0_21 = arith.constant 0 : index
      %26 = vector.load %arg6[%c0_20, %c0_21] : memref<1x128xf32, #tpu.memory_space<vmem>>, vector<1x128xf32>
      %27 = vector.broadcast %26 : vector<1x128xf32> to vector<32x128xf32>
      %28 = arith.addf %25, %27 : vector<32x128xf32>
      %c0_22 = arith.constant 0 : index
      %c0_23 = arith.constant 0 : index
      %29 = vector.load %arg7[%c0_22, %c0_23] : memref<32x128xf32, #tpu.memory_space<vmem>>, vector<32x128xf32>
      tpu.vector_store %arg7[%c0_22, %c0_23], %28 {strides = array<i32>} : memref<32x128xf32, #tpu.memory_space<vmem>>, vector<32x128xf32>,
    } else {
    }
    return
  }
  func.func @transform_0(%arg0: i32, %arg1: i32) -> (i32, i32) {
    %c0_i32 = arith.constant 0 : i32
    %c0_i32_0 = arith.constant 0 : i32
    return %arg0, %c0_i32 : i32, i32
  }
  func.func @transform_1(%arg0: i32, %arg1: i32) -> (i32, i32) {
    %c0_i32 = arith.constant 0 : i32
    %c0_i32_0 = arith.constant 0 : i32
    return %c0_i32, %arg1 : i32, i32
  }
  func.func @transform_2(%arg0: i32, %arg1: i32) -> (i32, i32) {
    %c0_i32 = arith.constant 0 : i32
    %c0_i32_0 = arith.constant 0 : i32
    return %c0_i32, %arg1 : i32, i32
  }
  func.func @transform_3(%arg0: i32, %arg1: i32) -> (i32, i32) {
    %c0_i32 = arith.constant 0 : i32
    %c0_i32_0 = arith.constant 0 : i32
    return %arg1, %c0_i32 : i32, i32
  }
  func.func @transform_4(%arg0: i32, %arg1: i32) -> (i32, i32) {
    %c0_i32 = arith.constant 0 : i32
    %c0_i32_0 = arith.constant 0 : i32
    %c0_i32_1 = arith.constant 0 : i32
    return %c0_i32, %c0_i32_0 : i32, i32
  }
  func.func @transform_5(%arg0: i32, %arg1: i32) -> (i32, i32) {
    %c0_i32 = arith.constant 0 : i32
    %c0_i32_0 = arith.constant 0 : i32
    return %arg0, %c0_i32 : i32, i32
  }
}

</mosaic_0001>

<llo_original>
// kernel: tile.18
$region0: #{tile.18}
  #allocation0 [shape = 's32[1]{0}', space=sflag, size = 0x4, scoped, tag = 'scoped memory for tile.18']
  %s0 = inlined_call_operand.vmem [shape: f32[32], index: 0, kind: input, shape index: {}]
  %s1 = inlined_call_operand.vmem [shape: f32[4,32], index: 1, kind: output, shape index: {}]
  // Predicated region
  $region2: #{tile.18} parent=0 // pred_check
    _
  $region3: #{tile.18} parent=0 // pred_check_branch
    %3 = sbr.rel (0) target = $region5
  $region4: #{tile.18} parent=0 // pred_region
    _
  $region5: #{tile.18} parent=0 // pred_fallthru
    _
  %v4 = vld [vmem:[%s0] ss:$0 sm:$0xff]
  %5 = vst [vmem:[%s1] sm:$0xf] %v4

// kernel: tile.13
$region0: #{tile.13}
  #allocation0 [shape = 's32[1]{0}', space=sflag, size = 0x4, scoped, tag = 'scoped memory for tile.13']
  %s0 = inlined_call_operand.vmem [shape: f32[128], index: 0, kind: input, shape index: {}]
  %s1 = inlined_call_operand.vmem [shape: f32[4,128], index: 1, kind: output, shape index: {}]
  // Predicated region
  $region2: #{tile.13} parent=0 // pred_check
    _
  $region3: #{tile.13} parent=0 // pred_check_branch
    %3 = sbr.rel (0) target = $region5
  $region4: #{tile.13} parent=0 // pred_region
    _
  $region5: #{tile.13} parent=0 // pred_fallthru
    _
  %v4 = vld [vmem:[%s0] ss:$0 sm:$0xff]
  %5 = vst [vmem:[%s1] sm:$0xf] %v4

// kernel: tile.19
$region0: #{tile.19}
  %s0 = inlined_call_operand.vmem [shape: f32[4,32], index: 0, kind: input, shape index: {}]
  %s1 = inlined_call_operand.vmem [shape: f32[1,128], index: 1, kind: output, shape index: {}]
  $region1: #{tile.19} parent=0
    #allocation0 [shape = 'u8[4096]{0}', space=vmem, size = 0x1000, scoped, tag = 'scoped mem for output reshape']
    #allocation1 [shape = 'u8[4096]{0}', space=vmem, size = 0x1000, scoped, tag = 'scoped mem for input reshape']
    %s3 = sshll.u32 1, 4
    %s4 = ssub.s32 %s3, 1
    %v5 = vld [vmem:[%s0] sm:%s4]
    %6 = vst [vmem:[#allocation1] sm:%s4] %v5
    %v7 = vld [vmem:[#allocation1] sm:$0x1]
    %vm8 = vcmask 261120
    %9 = vst.msk [vmem:[#allocation0] sm:$0x1] %vm8, %v7
    %s10 = scalar_lea.vmem [#allocation1], 3
    %v11 = vld [vmem:[%s10] sm:$0x1]
    %12 = vrot.lane.b32.xlu0 %v11, 96
    %v13 = vpop.permute.xlu0 %12
    %vm14 = vcmask 1048320
    %15 = vst.msk [vmem:[#allocation0] sm:$0x1] %vm14, %v13
    %s16 = scalar_lea.vmem [#allocation1], 2
    %v17 = vld [vmem:[%s16] sm:$0x1]
    %18 = vrot.lane.b32.xlu0 %v17, 64
    %v19 = vpop.permute.xlu0 %18
    %vm20 = vcmask 785920
    %21 = vst.msk [vmem:[#allocation0] sm:$0x1] %vm20, %v19
    %s22 = scalar_lea.vmem [#allocation1], 1
    %v23 = vld [vmem:[%s22] sm:$0x1]
    %24 = vrot.lane.b32.xlu0 %v23, 32
    %v25 = vpop.permute.xlu0 %24
    %vm26 = vcmask 523520
    %27 = vst.msk [vmem:[#allocation0] sm:$0x1] %vm26, %v25
    %s29 = sshll.u32 1, 1
    %s30 = ssub.s32 %s29, 1
    %v32 = vld [vmem:[#allocation0] sm:%s30]
    %s33 = sshll.u32 1, 1
    %s34 = ssub.s32 %s33, 1
    %35 = vst [vmem:[%s1] sm:%s34] %v32

// kernel: conv2d_inplace_linear_mlp_block.1
$region0: #{conv2d_inplace_linear_mlp_block.1}
  #allocation0 [shape = 'u32[]', space=smem, size = 0x4, offset = 0x4, fixed_abs, tag = 'smem constant byte address 0x4 - core index']
  #allocation1 [shape = 'u32[144,128]{1,0:T(1,128)}', space=vmem, size = 0x12000, scoped, tag = 'internal scratch']
  #allocation2 [shape = 'f32[32,128]{1,0:T(8,128)}', space=vmem, size = 0x4000, scoped, tag = 'scratch operand']
  %s0 = inlined_call_operand.vmem [shape: f32[32,128], index: 0, kind: input, shape index: {}]
  %s1 = inlined_call_operand.vmem [shape: f32[128,512], index: 1, kind: input, shape index: {}]
  %s2 = inlined_call_operand.vmem [shape: f32[1,512], index: 2, kind: input, shape index: {}]
  %s3 = inlined_call_operand.vmem [shape: f32[512,128], index: 3, kind: input, shape index: {}]
  %s4 = inlined_call_operand.vmem [shape: f32[1,128], index: 4, kind: input, shape index: {}]
  %s5 = inlined_call_operand.vmem [shape: f32[32,128], index: 5, kind: output, shape index: {}]
  %s6 = sld [smem:[#allocation0]]
  $region38: #{conv2d_inplace_linear_mlp_block.1} parent=0
    _
  %s8 = ssub.s32 1, %s6
  %s9 = scalar_select 0, %s8, %s6
  // Predicated region
  $region2: #{conv2d_inplace_linear_mlp_block.1} parent=0 // pred_check
    _
  $region3: #{conv2d_inplace_linear_mlp_block.1} parent=0 // pred_check_branch
    %11 = sbr.rel (0) target = $region5
  $region4: #{conv2d_inplace_linear_mlp_block.1} parent=0 // pred_region
    _
  $region5: #{conv2d_inplace_linear_mlp_block.1} parent=0 // pred_fallthru
    _
  // Predicated region
  $region6: #{conv2d_inplace_linear_mlp_block.1} parent=0 // pred_check
    _
  $region7: #{conv2d_inplace_linear_mlp_block.1} parent=0 // pred_check_branch
    %13 = sbr.rel (0) target = $region9
  $region8: #{conv2d_inplace_linear_mlp_block.1} parent=0 // pred_region
    _
  $region9: #{conv2d_inplace_linear_mlp_block.1} parent=0 // pred_fallthru
    _
  // Predicated region
  $region10: #{conv2d_inplace_linear_mlp_block.1} parent=0 // pred_check
    _
  $region11: #{conv2d_inplace_linear_mlp_block.1} parent=0 // pred_check_branch
    %15 = sbr.rel (0) target = $region13
  $region12: #{conv2d_inplace_linear_mlp_block.1} parent=0 // pred_region
    _
  $region13: #{conv2d_inplace_linear_mlp_block.1} parent=0 // pred_fallthru
    _
  // Predicated region
  $region14: #{conv2d_inplace_linear_mlp_block.1} parent=0 // pred_check
    _
  $region15: #{conv2d_inplace_linear_mlp_block.1} parent=0 // pred_check_branch
    %17 = sbr.rel (0) target = $region17
  $region16: #{conv2d_inplace_linear_mlp_block.1} parent=0 // pred_region
    _
  $region17: #{conv2d_inplace_linear_mlp_block.1} parent=0 // pred_fallthru
    _
  // Predicated region
  $region18: #{conv2d_inplace_linear_mlp_block.1} parent=0 // pred_check
    _
  $region19: #{conv2d_inplace_linear_mlp_block.1} parent=0 // pred_check_branch
    %19 = sbr.rel (0) target = $region21
  $region20: #{conv2d_inplace_linear_mlp_block.1} parent=0 // pred_region
    _
  $region21: #{conv2d_inplace_linear_mlp_block.1} parent=0 // pred_fallthru
    _
  %p20 = scmp.eq.s32.totalorder 0, 0
  // Predicated region
  $region22: #{conv2d_inplace_linear_mlp_block.1} parent=0 // pred_check
    %p21 = pneg %p20
  $region23: #{conv2d_inplace_linear_mlp_block.1} parent=0 // pred_check_branch
    %23 = sbr.rel (%p21) target = $region25
  $region24: #{conv2d_inplace_linear_mlp_block.1} parent=0 // pred_region
    %24 = vst [vmem:[#allocation2] sm:$0xff] 0.0
    %25 = vst [vmem:[#allocation2 + $0x8] sm:$0xff] 0.0
    %26 = vst [vmem:[#allocation2 + $0x10] sm:$0xff] 0.0
    %27 = vst [vmem:[#allocation2 + $0x18] sm:$0xff] 0.0
  $region25: #{conv2d_inplace_linear_mlp_block.1} parent=0 // pred_fallthru
    _
  %v28 = vld [vmem:[%s0] sm:$0xff]
  %v29 = vld [vmem:[%s0 + $0x8] sm:$0xff]
  %v30 = vld [vmem:[%s0 + $0x10] sm:$0xff]
  %v31 = vld [vmem:[%s0 + $0x18] sm:$0xff]
  %v32 = vld [vmem:[%s1] sm:$0xff]
  %v33 = vld [vmem:[%s1 + $0x8] sm:$0xff]
  %v34 = vld [vmem:[%s1 + $0x10] sm:$0xff]
  %v35 = vld [vmem:[%s1 + $0x18] sm:$0xff]
  %v36 = vld [vmem:[%s1 + $0x20] sm:$0xff]
  %v37 = vld [vmem:[%s1 + $0x28] sm:$0xff]
  %v38 = vld [vmem:[%s1 + $0x30] sm:$0xff]
  %v39 = vld [vmem:[%s1 + $0x38] sm:$0xff]
  %v40 = vld [vmem:[%s1 + $0x40] sm:$0xff]
  %v41 = vld [vmem:[%s1 + $0x48] sm:$0xff]
  %v42 = vld [vmem:[%s1 + $0x50] sm:$0xff]
  %v43 = vld [vmem:[%s1 + $0x58] sm:$0xff]
  %v44 = vld [vmem:[%s1 + $0x60] sm:$0xff]
  %v45 = vld [vmem:[%s1 + $0x68] sm:$0xff]
  %v46 = vld [vmem:[%s1 + $0x70] sm:$0xff]
  %v47 = vld [vmem:[%s1 + $0x78] sm:$0xff]
  %v48 = vld [vmem:[%s1 + $0x80] sm:$0xff]
  %v49 = vld [vmem:[%s1 + $0x88] sm:$0xff]
  %v50 = vld [vmem:[%s1 + $0x90] sm:$0xff]
  %v51 = vld [vmem:[%s1 + $0x98] sm:$0xff]
  %v52 = vld [vmem:[%s1 + $0xa0] sm:$0xff]
  %v53 = vld [vmem:[%s1 + $0xa8] sm:$0xff]
  %v54 = vld [vmem:[%s1 + $0xb0] sm:$0xff]
  %v55 = vld [vmem:[%s1 + $0xb8] sm:$0xff]
  %v56 = vld [vmem:[%s1 + $0xc0] sm:$0xff]
  %v57 = vld [vmem:[%s1 + $0xc8] sm:$0xff]
  %v58 = vld [vmem:[%s1 + $0xd0] sm:$0xff]
  %v59 = vld [vmem:[%s1 + $0xd8] sm:$0xff]
  %v60 = vld [vmem:[%s1 + $0xe0] sm:$0xff]
  %v61 = vld [vmem:[%s1 + $0xe8] sm:$0xff]
  %v62 = vld [vmem:[%s1 + $0xf0] sm:$0xff]
  %v63 = vld [vmem:[%s1 + $0xf8] sm:$0xff]
  %v64 = vld [vmem:[%s1 + $0x100] sm:$0xff]
  %v65 = vld [vmem:[%s1 + $0x108] sm:$0xff]
  %v66 = vld [vmem:[%s1 + $0x110] sm:$0xff]
  %v67 = vld [vmem:[%s1 + $0x118] sm:$0xff]
  %v68 = vld [vmem:[%s1 + $0x120] sm:$0xff]
  %v69 = vld [vmem:[%s1 + $0x128] sm:$0xff]
  %v70 = vld [vmem:[%s1 + $0x130] sm:$0xff]
  %v71 = vld [vmem:[%s1 + $0x138] sm:$0xff]
  %v72 = vld [vmem:[%s1 + $0x140] sm:$0xff]
  %v73 = vld [vmem:[%s1 + $0x148] sm:$0xff]
  %v74 = vld [vmem:[%s1 + $0x150] sm:$0xff]
  %v75 = vld [vmem:[%s1 + $0x158] sm:$0xff]
  %v76 = vld [vmem:[%s1 + $0x160] sm:$0xff]
  %v77 = vld [vmem:[%s1 + $0x168] sm:$0xff]
  %v78 = vld [vmem:[%s1 + $0x170] sm:$0xff]
  %v79 = vld [vmem:[%s1 + $0x178] sm:$0xff]
  %v80 = vld [vmem:[%s1 + $0x180] sm:$0xff]
  %v81 = vld [vmem:[%s1 + $0x188] sm:$0xff]
  %v82 = vld [vmem:[%s1 + $0x190] sm:$0xff]
  %v83 = vld [vmem:[%s1 + $0x198] sm:$0xff]
  %v84 = vld [vmem:[%s1 + $0x1a0] sm:$0xff]
  %v85 = vld [vmem:[%s1 + $0x1a8] sm:$0xff]
  %v86 = vld [vmem:[%s1 + $0x1b0] sm:$0xff]
  %v87 = vld [vmem:[%s1 + $0x1b8] sm:$0xff]
  %v88 = vld [vmem:[%s1 + $0x1c0] sm:$0xff]
  %v89 = vld [vmem:[%s1 + $0x1c8] sm:$0xff]
  %v90 = vld [vmem:[%s1 + $0x1d0] sm:$0xff]
  %v91 = vld [vmem:[%s1 + $0x1d8] sm:$0xff]
  %v92 = vld [vmem:[%s1 + $0x1e0] sm:$0xff]
  %v93 = vld [vmem:[%s1 + $0x1e8] sm:$0xff]
  %v94 = vld [vmem:[%s1 + $0x1f0] sm:$0xff]
  %v95 = vld [vmem:[%s1 + $0x1f8] sm:$0xff]
  %v96 = vld [vmem:[%s2] sm:$0xf]
  %v98 = vlaneseq
  %v99 = vshrl.u32 %v98, 7
  %v100 = vsub.s32 0, %v99
  %v101 = vrot.slane %v96, %v100
  %v102 = vlaneseq
  %v103 = vshrl.u32 %v102, 7
  %v104 = vsub.s32 1, %v103
  %v105 = vrot.slane %v96, %v104
  %v106 = vlaneseq
  %v107 = vshrl.u32 %v106, 7
  %v108 = vsub.s32 2, %v107
  %v109 = vrot.slane %v96, %v108
  %v110 = vlaneseq
  %v111 = vshrl.u32 %v110, 7
  %v112 = vsub.s32 3, %v111
  %v113 = vrot.slane %v96, %v112
  %118 = vmatprep.subr.mxu0 %v93
  %119 = vmatpush1.msra.mxu0 %v92
  %120 = vmatprep.subr.mxu0 %v89
  %121 = vmatpush1.msra.mxu0 %v88
  %122 = vmatprep.subr.mxu0 %v85
  %123 = vmatpush1.msra.mxu0 %v84
  %124 = vmatprep.subr.mxu0 %v81
  %125 = vmatpush1.msra.mxu0 %v80
  %126 = vmatprep.subr.mxu0 %v77
  %127 = vmatpush1.msra.mxu0 %v76
  %128 = vmatprep.subr.mxu0 %v73
  %129 = vmatpush1.msra.mxu0 %v72
  %130 = vmatprep.subr.mxu0 %v69
  %131 = vmatpush1.msra.mxu0 %v68
  %132 = vmatprep.subr.mxu0 %v65
  %133 = vmatpush1.msra.mxu0 %v64
  %134 = vmatprep.subr.mxu0 %v61
  %135 = vmatpush1.msra.mxu0 %v60
  %136 = vmatprep.subr.mxu0 %v57
  %137 = vmatpush1.msra.mxu0 %v56
  %138 = vmatprep.subr.mxu0 %v53
  %139 = vmatpush1.msra.mxu0 %v52
  %140 = vmatprep.subr.mxu0 %v49
  %141 = vmatpush1.msra.mxu0 %v48
  %142 = vmatprep.subr.mxu0 %v45
  %143 = vmatpush1.msra.mxu0 %v44
  %144 = vmatprep.subr.mxu0 %v41
  %145 = vmatpush1.msra.mxu0 %v40
  %146 = vmatprep.subr.mxu0 %v37
  %147 = vmatpush1.msra.mxu0 %v36
  %148 = vmatprep.subr.mxu0 %v33
  %149 = vmatpush1.msra.mxu0 %v32
  %150 = vmatprep.subr.mxu0 0.0
  %151 = vmatpush2.msra.mxu0 0.0
  %152 = vmatprep.subr.mxu0 0.0
  %153 = vmatpush2.msra.mxu0 0.0
  %154 = vmatprep.subr.mxu0 0.0
  %155 = vmatpush2.msra.mxu0 0.0
  %156 = vmatprep.subr.mxu0 0.0
  %157 = vmatpush2.msra.mxu0 0.0
  %158 = vmatprep.subr.mxu0 0.0
  %159 = vmatpush2.msra.mxu0 0.0
  %160 = vmatprep.subr.mxu0 0.0
  %161 = vmatpush2.msra.mxu0 0.0
  %162 = vmatprep.subr.mxu0 0.0
  %163 = vmatpush2.msra.mxu0 0.0
  %164 = vmatprep.subr.mxu0 0.0
  %165 = vmatpush2.msra.mxu0 0.0
  %166 = vmatprep.subr.mxu0 0.0
  %167 = vmatpush2.msra.mxu0 0.0
  %168 = vmatprep.subr.mxu0 0.0
  %169 = vmatpush2.msra.mxu0 0.0
  %170 = vmatprep.subr.mxu0 0.0
  %171 = vmatpush2.msra.mxu0 0.0
  %172 = vmatprep.subr.mxu0 0.0
  %173 = vmatpush2.msra.mxu0 0.0
  %174 = vmatprep.subr.mxu0 0.0
  %175 = vmatpush2.msra.mxu0 0.0
  %176 = vmatprep.subr.mxu0 0.0
  %177 = vmatpush2.msra.mxu0 0.0
  %178 = vmatprep.subr.mxu0 0.0
  %179 = vmatpush2.msra.mxu0 0.0
  %180 = vmatprep.subr.mxu0 0.0
  %181 = vmatpush2.msra.mxu0 0.0
  %182 = vmatprep.mubr.f32.mxu0 0.0
  %183 = vmatmul.mubr.f32.gmra.mxu0 %v28
  %v184 = vpop.f32.mrf.mxu0
  %v185 = vadd.f32 %v101, %v184
  %v186 = vpop.f32.mrf.mxu0
  %v187 = vadd.f32 %v105, %v186
  %188 = vmatprep.mubr.f32.mxu0 0.0
  %189 = vmatmul.mubr.f32.gmra.mxu0 %v29
  %v190 = vpop.f32.mrf.mxu0
  %v191 = vadd.f32 %v101, %v190
  %v192 = vpop.f32.mrf.mxu0
  %v193 = vadd.f32 %v105, %v192
  %194 = vmatprep.mubr.f32.mxu0 0.0
  %195 = vmatmul.mubr.f32.gmra.mxu0 %v30
  %v196 = vpop.f32.mrf.mxu0
  %v197 = vadd.f32 %v101, %v196
  %v198 = vpop.f32.mrf.mxu0
  %v199 = vadd.f32 %v105, %v198
  %200 = vmatprep.mubr.f32.mxu0 0.0
  %201 = vmatmul.mubr.f32.gmra.mxu0 %v31
  %v202 = vpop.f32.mrf.mxu0
  %v203 = vadd.f32 %v101, %v202
  %v204 = vpop.f32.mrf.mxu0
  %v205 = vadd.f32 %v105, %v204
  %206 = vdwg.mxu0
  %207 = vmatprep.subr.mxu0 %v95
  %208 = vmatpush1.msra.mxu0 %v94
  %209 = vmatprep.subr.mxu0 %v91
  %210 = vmatpush1.msra.mxu0 %v90
  %211 = vmatprep.subr.mxu0 %v87
  %212 = vmatpush1.msra.mxu0 %v86
  %213 = vmatprep.subr.mxu0 %v83
  %214 = vmatpush1.msra.mxu0 %v82
  %215 = vmatprep.subr.mxu0 %v79
  %216 = vmatpush1.msra.mxu0 %v78
  %217 = vmatprep.subr.mxu0 %v75
  %218 = vmatpush1.msra.mxu0 %v74
  %219 = vmatprep.subr.mxu0 %v71
  %220 = vmatpush1.msra.mxu0 %v70
  %221 = vmatprep.subr.mxu0 %v67
  %222 = vmatpush1.msra.mxu0 %v66
  %223 = vmatprep.subr.mxu0 %v63
  %224 = vmatpush1.msra.mxu0 %v62
  %225 = vmatprep.subr.mxu0 %v59
  %226 = vmatpush1.msra.mxu0 %v58
  %227 = vmatprep.subr.mxu0 %v55
  %228 = vmatpush1.msra.mxu0 %v54
  %229 = vmatprep.subr.mxu0 %v51
  %230 = vmatpush1.msra.mxu0 %v50
  %231 = vmatprep.subr.mxu0 %v47
  %232 = vmatpush1.msra.mxu0 %v46
  %233 = vmatprep.subr.mxu0 %v43
  %234 = vmatpush1.msra.mxu0 %v42
  %235 = vmatprep.subr.mxu0 %v39
  %236 = vmatpush1.msra.mxu0 %v38
  %237 = vmatprep.subr.mxu0 %v35
  %238 = vmatpush1.msra.mxu0 %v34
  %239 = vmatprep.subr.mxu0 0.0
  %240 = vmatpush2.msra.mxu0 0.0
  %241 = vmatprep.subr.mxu0 0.0
  %242 = vmatpush2.msra.mxu0 0.0
  %243 = vmatprep.subr.mxu0 0.0
  %244 = vmatpush2.msra.mxu0 0.0
  %245 = vmatprep.subr.mxu0 0.0
  %246 = vmatpush2.msra.mxu0 0.0
  %247 = vmatprep.subr.mxu0 0.0
  %248 = vmatpush2.msra.mxu0 0.0
  %249 = vmatprep.subr.mxu0 0.0
  %250 = vmatpush2.msra.mxu0 0.0
  %251 = vmatprep.subr.mxu0 0.0
  %252 = vmatpush2.msra.mxu0 0.0
  %253 = vmatprep.subr.mxu0 0.0
  %254 = vmatpush2.msra.mxu0 0.0
  %255 = vmatprep.subr.mxu0 0.0
  %256 = vmatpush2.msra.mxu0 0.0
  %257 = vmatprep.subr.mxu0 0.0
  %258 = vmatpush2.msra.mxu0 0.0
  %259 = vmatprep.subr.mxu0 0.0
  %260 = vmatpush2.msra.mxu0 0.0
  %261 = vmatprep.subr.mxu0 0.0
  %262 = vmatpush2.msra.mxu0 0.0
  %263 = vmatprep.subr.mxu0 0.0
  %264 = vmatpush2.msra.mxu0 0.0
  %265 = vmatprep.subr.mxu0 0.0
  %266 = vmatpush2.msra.mxu0 0.0
  %267 = vmatprep.subr.mxu0 0.0
  %268 = vmatpush2.msra.mxu0 0.0
  %269 = vmatprep.subr.mxu0 0.0
  %270 = vmatpush2.msra.mxu0 0.0
  %271 = vmatprep.mubr.f32.mxu0 0.0
  %272 = vmatmul.mubr.f32.gmra.mxu0 %v28
  %v273 = vpop.f32.mrf.mxu0
  %v274 = vadd.f32 %v109, %v273
  %v275 = vpop.f32.mrf.mxu0
  %v276 = vadd.f32 %v113, %v275
  %277 = vmatprep.mubr.f32.mxu0 0.0
  %278 = vmatmul.mubr.f32.gmra.mxu0 %v29
  %v279 = vpop.f32.mrf.mxu0
  %v280 = vadd.f32 %v109, %v279
  %v281 = vpop.f32.mrf.mxu0
  %v282 = vadd.f32 %v113, %v281
  %283 = vmatprep.mubr.f32.mxu0 0.0
  %284 = vmatmul.mubr.f32.gmra.mxu0 %v30
  %v285 = vpop.f32.mrf.mxu0
  %v286 = vadd.f32 %v109, %v285
  %v287 = vpop.f32.mrf.mxu0
  %v288 = vadd.f32 %v113, %v287
  %289 = vmatprep.mubr.f32.mxu0 0.0
  %290 = vmatmul.mubr.f32.gmra.mxu0 %v31
  %v291 = vpop.f32.mrf.mxu0
  %v292 = vadd.f32 %v109, %v291
  %v293 = vpop.f32.mrf.mxu0
  %v294 = vadd.f32 %v113, %v293
  %295 = vdwg.mxu0
  %v296 = vmul.f32 %v185, 0.5
  %v297 = vmul.f32 %v187, 0.5
  %v298 = vmul.f32 %v274, 0.5
  %v299 = vmul.f32 %v276, 0.5
  %v300 = vmul.f32 %v191, 0.5
  %v301 = vmul.f32 %v193, 0.5
  %v302 = vmul.f32 %v280, 0.5
  %v303 = vmul.f32 %v282, 0.5
  %v304 = vmul.f32 %v197, 0.5
  %v305 = vmul.f32 %v199, 0.5
  %v306 = vmul.f32 %v286, 0.5
  %v307 = vmul.f32 %v288, 0.5
  %v308 = vmul.f32 %v203, 0.5
  %v309 = vmul.f32 %v205, 0.5
  %v310 = vmul.f32 %v292, 0.5
  %v311 = vmul.f32 %v294, 0.5
  %v312 = vmul.f32 %v185, 0.70710677
  %v313 = vmul.f32 %v187, 0.70710677
  %v314 = vmul.f32 %v274, 0.70710677
  %v315 = vmul.f32 %v276, 0.70710677
  %v316 = vmul.f32 %v191, 0.70710677
  %v317 = vmul.f32 %v193, 0.70710677
  %v318 = vmul.f32 %v280, 0.70710677
  %v319 = vmul.f32 %v282, 0.70710677
  %v320 = vmul.f32 %v197, 0.70710677
  %v321 = vmul.f32 %v199, 0.70710677
  %v322 = vmul.f32 %v286, 0.70710677
  %v323 = vmul.f32 %v288, 0.70710677
  %v324 = vmul.f32 %v203, 0.70710677
  %v325 = vmul.f32 %v205, 0.70710677
  %v326 = vmul.f32 %v292, 0.70710677
  %v327 = vmul.f32 %v294, 0.70710677
  %v328 = verf.f32.pop %v312
  %v329 = verf.f32.pop %v313
  %v330 = verf.f32.pop %v314
  %v331 = verf.f32.pop %v315
  %v332 = verf.f32.pop %v316
  %v333 = verf.f32.pop %v317
  %v334 = verf.f32.pop %v318
  %v335 = verf.f32.pop %v319
  %v336 = verf.f32.pop %v320
  %v337 = verf.f32.pop %v321
  %v338 = verf.f32.pop %v322
  %v339 = verf.f32.pop %v323
  %v340 = verf.f32.pop %v324
  %v341 = verf.f32.pop %v325
  %v342 = verf.f32.pop %v326
  %v343 = verf.f32.pop %v327
  %v344 = vadd.f32 %v328, 1.0
  %v345 = vadd.f32 %v329, 1.0
  %v346 = vadd.f32 %v330, 1.0
  %v347 = vadd.f32 %v331, 1.0
  %v348 = vadd.f32 %v332, 1.0
  %v349 = vadd.f32 %v333, 1.0
  %v350 = vadd.f32 %v334, 1.0
  %v351 = vadd.f32 %v335, 1.0
  %v352 = vadd.f32 %v336, 1.0
  %v353 = vadd.f32 %v337, 1.0
  %v354 = vadd.f32 %v338, 1.0
  %v355 = vadd.f32 %v339, 1.0
  %v356 = vadd.f32 %v340, 1.0
  %v357 = vadd.f32 %v341, 1.0
  %v358 = vadd.f32 %v342, 1.0
  %v359 = vadd.f32 %v343, 1.0
  %v360 = vmul.f32 %v296, %v344
  %v361 = vmul.f32 %v297, %v345
  %v362 = vmul.f32 %v298, %v346
  %v363 = vmul.f32 %v299, %v347
  %v364 = vmul.f32 %v300, %v348
  %v365 = vmul.f32 %v301, %v349
  %v366 = vmul.f32 %v302, %v350
  %v367 = vmul.f32 %v303, %v351
  %v368 = vmul.f32 %v304, %v352
  %v369 = vmul.f32 %v305, %v353
  %v370 = vmul.f32 %v306, %v354
  %v371 = vmul.f32 %v307, %v355
  %v372 = vmul.f32 %v308, %v356
  %v373 = vmul.f32 %v309, %v357
  %v374 = vmul.f32 %v310, %v358
  %v375 = vmul.f32 %v311, %v359
  %v376 = vld [vmem:[#allocation2] sm:$0xff]
  %v377 = vld [vmem:[#allocation2 + $0x8] sm:$0xff]
  %v378 = vld [vmem:[#allocation2 + $0x10] sm:$0xff]
  %v379 = vld [vmem:[#allocation2 + $0x18] sm:$0xff]
  %v380 = vld [vmem:[%s3] sm:$0xff]
  %v381 = vld [vmem:[%s3 + $0x8] sm:$0xff]
  %v382 = vld [vmem:[%s3 + $0x10] sm:$0xff]
  %v383 = vld [vmem:[%s3 + $0x18] sm:$0xff]
  %v384 = vld [vmem:[%s3 + $0x20] sm:$0xff]
  %v385 = vld [vmem:[%s3 + $0x28] sm:$0xff]
  %v386 = vld [vmem:[%s3 + $0x30] sm:$0xff]
  %v387 = vld [vmem:[%s3 + $0x38] sm:$0xff]
  %v388 = vld [vmem:[%s3 + $0x40] sm:$0xff]
  %v389 = vld [vmem:[%s3 + $0x48] sm:$0xff]
  %v390 = vld [vmem:[%s3 + $0x50] sm:$0xff]
  %v391 = vld [vmem:[%s3 + $0x58] sm:$0xff]
  %v392 = vld [vmem:[%s3 + $0x60] sm:$0xff]
  %v393 = vld [vmem:[%s3 + $0x68] sm:$0xff]
  %v394 = vld [vmem:[%s3 + $0x70] sm:$0xff]
  %v395 = vld [vmem:[%s3 + $0x78] sm:$0xff]
  %v396 = vld [vmem:[%s3 + $0x80] sm:$0xff]
  %v397 = vld [vmem:[%s3 + $0x88] sm:$0xff]
  %v398 = vld [vmem:[%s3 + $0x90] sm:$0xff]
  %v399 = vld [vmem:[%s3 + $0x98] sm:$0xff]
  %v400 = vld [vmem:[%s3 + $0xa0] sm:$0xff]
  %v401 = vld [vmem:[%s3 + $0xa8] sm:$0xff]
  %v402 = vld [vmem:[%s3 + $0xb0] sm:$0xff]
  %v403 = vld [vmem:[%s3 + $0xb8] sm:$0xff]
  %v404 = vld [vmem:[%s3 + $0xc0] sm:$0xff]
  %v405 = vld [vmem:[%s3 + $0xc8] sm:$0xff]
  %v406 = vld [vmem:[%s3 + $0xd0] sm:$0xff]
  %v407 = vld [vmem:[%s3 + $0xd8] sm:$0xff]
  %v408 = vld [vmem:[%s3 + $0xe0] sm:$0xff]
  %v409 = vld [vmem:[%s3 + $0xe8] sm:$0xff]
  %v410 = vld [vmem:[%s3 + $0xf0] sm:$0xff]
  %v411 = vld [vmem:[%s3 + $0xf8] sm:$0xff]
  %v412 = vld [vmem:[%s3 + $0x100] sm:$0xff]
  %v413 = vld [vmem:[%s3 + $0x108] sm:$0xff]
  %v414 = vld [vmem:[%s3 + $0x110] sm:$0xff]
  %v415 = vld [vmem:[%s3 + $0x118] sm:$0xff]
  %v416 = vld [vmem:[%s3 + $0x120] sm:$0xff]
  %v417 = vld [vmem:[%s3 + $0x128] sm:$0xff]
  %v418 = vld [vmem:[%s3 + $0x130] sm:$0xff]
  %v419 = vld [vmem:[%s3 + $0x138] sm:$0xff]
  %v420 = vld [vmem:[%s3 + $0x140] sm:$0xff]
  %v421 = vld [vmem:[%s3 + $0x148] sm:$0xff]
  %v422 = vld [vmem:[%s3 + $0x150] sm:$0xff]
  %v423 = vld [vmem:[%s3 + $0x158] sm:$0xff]
  %v424 = vld [vmem:[%s3 + $0x160] sm:$0xff]
  %v425 = vld [vmem:[%s3 + $0x168] sm:$0xff]
  %v426 = vld [vmem:[%s3 + $0x170] sm:$0xff]
  %v427 = vld [vmem:[%s3 + $0x178] sm:$0xff]
  %v428 = vld [vmem:[%s3 + $0x180] sm:$0xff]
  %v429 = vld [vmem:[%s3 + $0x188] sm:$0xff]
  %v430 = vld [vmem:[%s3 + $0x190] sm:$0xff]
  %v431 = vld [vmem:[%s3 + $0x198] sm:$0xff]
  %v432 = vld [vmem:[%s3 + $0x1a0] sm:$0xff]
  %v433 = vld [vmem:[%s3 + $0x1a8] sm:$0xff]
  %v434 = vld [vmem:[%s3 + $0x1b0] sm:$0xff]
  %v435 = vld [vmem:[%s3 + $0x1b8] sm:$0xff]
  %v436 = vld [vmem:[%s3 + $0x1c0] sm:$0xff]
  %v437 = vld [vmem:[%s3 + $0x1c8] sm:$0xff]
  %v438 = vld [vmem:[%s3 + $0x1d0] sm:$0xff]
  %v439 = vld [vmem:[%s3 + $0x1d8] sm:$0xff]
  %v440 = vld [vmem:[%s3 + $0x1e0] sm:$0xff]
  %v441 = vld [vmem:[%s3 + $0x1e8] sm:$0xff]
  %v442 = vld [vmem:[%s3 + $0x1f0] sm:$0xff]
  %v443 = vld [vmem:[%s3 + $0x1f8] sm:$0xff]
  %444 = vmatprep.subr.mxu0 0.0
  %445 = vmatpush1.msra.mxu0 %v395
  %446 = vmatprep.subr.mxu0 0.0
  %447 = vmatpush1.msra.mxu0 %v394
  %448 = vmatprep.subr.mxu0 0.0
  %449 = vmatpush1.msra.mxu0 %v393
  %450 = vmatprep.subr.mxu0 0.0
  %451 = vmatpush1.msra.mxu0 %v392
  %452 = vmatprep.subr.mxu0 0.0
  %453 = vmatpush1.msra.mxu0 %v391
  %454 = vmatprep.subr.mxu0 0.0
  %455 = vmatpush1.msra.mxu0 %v390
  %456 = vmatprep.subr.mxu0 0.0
  %457 = vmatpush1.msra.mxu0 %v389
  %458 = vmatprep.subr.mxu0 0.0
  %459 = vmatpush1.msra.mxu0 %v388
  %460 = vmatprep.subr.mxu0 0.0
  %461 = vmatpush1.msra.mxu0 %v387
  %462 = vmatprep.subr.mxu0 0.0
  %463 = vmatpush1.msra.mxu0 %v386
  %464 = vmatprep.subr.mxu0 0.0
  %465 = vmatpush1.msra.mxu0 %v385
  %466 = vmatprep.subr.mxu0 0.0
  %467 = vmatpush1.msra.mxu0 %v384
  %468 = vmatprep.subr.mxu0 0.0
  %469 = vmatpush1.msra.mxu0 %v383
  %470 = vmatprep.subr.mxu0 0.0
  %471 = vmatpush1.msra.mxu0 %v382
  %472 = vmatprep.subr.mxu0 0.0
  %473 = vmatpush1.msra.mxu0 %v381
  %474 = vmatprep.subr.mxu0 0.0
  %475 = vmatpush1.msra.mxu0 %v380
  %476 = vmatprep.subr.mxu0 0.0
  %477 = vmatpush2.msra.mxu0 %v411
  %478 = vmatprep.subr.mxu0 0.0
  %479 = vmatpush2.msra.mxu0 %v410
  %480 = vmatprep.subr.mxu0 0.0
  %481 = vmatpush2.msra.mxu0 %v409
  %482 = vmatprep.subr.mxu0 0.0
  %483 = vmatpush2.msra.mxu0 %v408
  %484 = vmatprep.subr.mxu0 0.0
  %485 = vmatpush2.msra.mxu0 %v407
  %486 = vmatprep.subr.mxu0 0.0
  %487 = vmatpush2.msra.mxu0 %v406
  %488 = vmatprep.subr.mxu0 0.0
  %489 = vmatpush2.msra.mxu0 %v405
  %490 = vmatprep.subr.mxu0 0.0
  %491 = vmatpush2.msra.mxu0 %v404
  %492 = vmatprep.subr.mxu0 0.0
  %493 = vmatpush2.msra.mxu0 %v403
  %494 = vmatprep.subr.mxu0 0.0
  %495 = vmatpush2.msra.mxu0 %v402
  %496 = vmatprep.subr.mxu0 0.0
  %497 = vmatpush2.msra.mxu0 %v401
  %498 = vmatprep.subr.mxu0 0.0
  %499 = vmatpush2.msra.mxu0 %v400
  %500 = vmatprep.subr.mxu0 0.0
  %501 = vmatpush2.msra.mxu0 %v399
  %502 = vmatprep.subr.mxu0 0.0
  %503 = vmatpush2.msra.mxu0 %v398
  %504 = vmatprep.subr.mxu0 0.0
  %505 = vmatpush2.msra.mxu0 %v397
  %506 = vmatprep.subr.mxu0 0.0
  %507 = vmatpush2.msra.mxu0 %v396
  %508 = vmatprep.mubr.f32.mxu0 %v361
  %509 = vmatmul.mubr.f32.gmra.mxu0 %v360
  %v510 = vpop.f32.mrf.mxu0
  %v511 = vadd.f32 0.0, %v510
  %v512 = vpop.f32.mrf.mxu0
  %513 = vmatprep.mubr.f32.mxu0 %v365
  %514 = vmatmul.mubr.f32.gmra.mxu0 %v364
  %v515 = vpop.f32.mrf.mxu0
  %v516 = vadd.f32 0.0, %v515
  %v517 = vpop.f32.mrf.mxu0
  %518 = vmatprep.mubr.f32.mxu0 %v369
  %519 = vmatmul.mubr.f32.gmra.mxu0 %v368
  %v520 = vpop.f32.mrf.mxu0
  %v521 = vadd.f32 0.0, %v520
  %v522 = vpop.f32.mrf.mxu0
  %523 = vmatprep.mubr.f32.mxu0 %v373
  %524 = vmatmul.mubr.f32.gmra.mxu0 %v372
  %v525 = vpop.f32.mrf.mxu0
  %v526 = vadd.f32 0.0, %v525
  %v527 = vpop.f32.mrf.mxu0
  %528 = vdwg.mxu0
  %529 = vmatprep.subr.mxu0 0.0
  %530 = vmatpush1.msra.mxu0 %v427
  %531 = vmatprep.subr.mxu0 0.0
  %532 = vmatpush1.msra.mxu0 %v426
  %533 = vmatprep.subr.mxu0 0.0
  %534 = vmatpush1.msra.mxu0 %v425
  %535 = vmatprep.subr.mxu0 0.0
  %536 = vmatpush1.msra.mxu0 %v424
  %537 = vmatprep.subr.mxu0 0.0
  %538 = vmatpush1.msra.mxu0 %v423
  %539 = vmatprep.subr.mxu0 0.0
  %540 = vmatpush1.msra.mxu0 %v422
  %541 = vmatprep.subr.mxu0 0.0
  %542 = vmatpush1.msra.mxu0 %v421
  %543 = vmatprep.subr.mxu0 0.0
  %544 = vmatpush1.msra.mxu0 %v420
  %545 = vmatprep.subr.mxu0 0.0
  %546 = vmatpush1.msra.mxu0 %v419
  %547 = vmatprep.subr.mxu0 0.0
  %548 = vmatpush1.msra.mxu0 %v418
  %549 = vmatprep.subr.mxu0 0.0
  %550 = vmatpush1.msra.mxu0 %v417
  %551 = vmatprep.subr.mxu0 0.0
  %552 = vmatpush1.msra.mxu0 %v416
  %553 = vmatprep.subr.mxu0 0.0
  %554 = vmatpush1.msra.mxu0 %v415
  %555 = vmatprep.subr.mxu0 0.0
  %556 = vmatpush1.msra.mxu0 %v414
  %557 = vmatprep.subr.mxu0 0.0
  %558 = vmatpush1.msra.mxu0 %v413
  %559 = vmatprep.subr.mxu0 0.0
  %560 = vmatpush1.msra.mxu0 %v412
  %561 = vmatprep.subr.mxu0 0.0
  %562 = vmatpush2.msra.mxu0 %v443
  %563 = vmatprep.subr.mxu0 0.0
  %564 = vmatpush2.msra.mxu0 %v442
  %565 = vmatprep.subr.mxu0 0.0
  %566 = vmatpush2.msra.mxu0 %v441
  %567 = vmatprep.subr.mxu0 0.0
  %568 = vmatpush2.msra.mxu0 %v440
  %569 = vmatprep.subr.mxu0 0.0
  %570 = vmatpush2.msra.mxu0 %v439
  %571 = vmatprep.subr.mxu0 0.0
  %572 = vmatpush2.msra.mxu0 %v438
  %573 = vmatprep.subr.mxu0 0.0
  %574 = vmatpush2.msra.mxu0 %v437
  %575 = vmatprep.subr.mxu0 0.0
  %576 = vmatpush2.msra.mxu0 %v436
  %577 = vmatprep.subr.mxu0 0.0
  %578 = vmatpush2.msra.mxu0 %v435
  %579 = vmatprep.subr.mxu0 0.0
  %580 = vmatpush2.msra.mxu0 %v434
  %581 = vmatprep.subr.mxu0 0.0
  %582 = vmatpush2.msra.mxu0 %v433
  %583 = vmatprep.subr.mxu0 0.0
  %584 = vmatpush2.msra.mxu0 %v432
  %585 = vmatprep.subr.mxu0 0.0
  %586 = vmatpush2.msra.mxu0 %v431
  %587 = vmatprep.subr.mxu0 0.0
  %588 = vmatpush2.msra.mxu0 %v430
  %589 = vmatprep.subr.mxu0 0.0
  %590 = vmatpush2.msra.mxu0 %v429
  %591 = vmatprep.subr.mxu0 0.0
  %592 = vmatpush2.msra.mxu0 %v428
  %593 = vmatprep.mubr.f32.mxu0 %v363
  %594 = vmatmul.mubr.f32.gmra.mxu0 %v362
  %v595 = vpop.f32.mrf.mxu0
  %v596 = vadd.f32 %v511, %v595
  %v597 = vpop.f32.mrf.mxu0
  %598 = vmatprep.mubr.f32.mxu0 %v367
  %599 = vmatmul.mubr.f32.gmra.mxu0 %v366
  %v600 = vpop.f32.mrf.mxu0
  %v601 = vadd.f32 %v516, %v600
  %v602 = vpop.f32.mrf.mxu0
  %603 = vmatprep.mubr.f32.mxu0 %v371
  %604 = vmatmul.mubr.f32.gmra.mxu0 %v370
  %v605 = vpop.f32.mrf.mxu0
  %v606 = vadd.f32 %v521, %v605
  %v607 = vpop.f32.mrf.mxu0
  %608 = vmatprep.mubr.f32.mxu0 %v375
  %609 = vmatmul.mubr.f32.gmra.mxu0 %v374
  %v610 = vpop.f32.mrf.mxu0
  %v611 = vadd.f32 %v526, %v610
  %v612 = vpop.f32.mrf.mxu0
  %613 = vdwg.mxu0
  %v614 = vadd.f32 %v376, %v596
  %v615 = vadd.f32 %v377, %v601
  %v616 = vadd.f32 %v378, %v606
  %v617 = vadd.f32 %v379, %v611
  %618 = vst [vmem:[#allocation2] sm:$0xff] %v614
  %619 = vst [vmem:[#allocation2 + $0x8] sm:$0xff] %v615
  %620 = vst [vmem:[#allocation2 + $0x10] sm:$0xff] %v616
  %621 = vst [vmem:[#allocation2 + $0x18] sm:$0xff] %v617
  // Predicated region
  $region26: #{conv2d_inplace_linear_mlp_block.1} parent=0 // pred_check
    %p622 = pneg %p20
  $region27: #{conv2d_inplace_linear_mlp_block.1} parent=0 // pred_check_branch
    %624 = sbr.rel (%p622) target = $region29
  $region28: #{conv2d_inplace_linear_mlp_block.1} parent=0 // pred_region
    %v625 = vld [vmem:[#allocation2] sm:$0xff]
    %v626 = vld [vmem:[#allocation2 + $0x8] sm:$0xff]
    %v627 = vld [vmem:[#allocation2 + $0x10] sm:$0xff]
    %v628 = vld [vmem:[#allocation2 + $0x18] sm:$0xff]
    %v629 = vld [vmem:[%s4] sm:$0x1]
    %v631 = vlaneseq
    %v632 = vshrl.u32 %v631, 7
    %v633 = vsub.s32 0, %v632
    %v634 = vrot.slane %v629, %v633
    %v636 = vadd.f32 %v625, %v634
    %v637 = vadd.f32 %v626, %v634
    %v638 = vadd.f32 %v627, %v634
    %v639 = vadd.f32 %v628, %v634
    %640 = vst [vmem:[%s5] sm:$0xff] %v636
    %641 = vst [vmem:[%s5 + $0x8] sm:$0xff] %v637
    %642 = vst [vmem:[%s5 + $0x10] sm:$0xff] %v638
    %643 = vst [vmem:[%s5 + $0x18] sm:$0xff] %v639
  $region29: #{conv2d_inplace_linear_mlp_block.1} parent=0 // pred_fallthru
    _
  // Predicated region
  $region30: #{conv2d_inplace_linear_mlp_block.1} parent=0 // pred_check
    _
  $region31: #{conv2d_inplace_linear_mlp_block.1} parent=0 // pred_check_branch
    %645 = sbr.rel (0) target = $region33
  $region32: #{conv2d_inplace_linear_mlp_block.1} parent=0 // pred_region
    _
  $region33: #{conv2d_inplace_linear_mlp_block.1} parent=0 // pred_fallthru
    _
  // Predicated region
  $region34: #{conv2d_inplace_linear_mlp_block.1} parent=0 // pred_check
    _
  $region35: #{conv2d_inplace_linear_mlp_block.1} parent=0 // pred_check_branch
    %647 = sbr.rel (0) target = $region37
  $region36: #{conv2d_inplace_linear_mlp_block.1} parent=0 // pred_region
    _
  $region37: #{conv2d_inplace_linear_mlp_block.1} parent=0 // pred_fallthru
    _

</llo_original>
